<compile_context>
chip_gen: v7x
topology: tpu7x:2x2x1
jax: 0.10.0
libtpu: 0.0.40
codegen_flags: <defaults>
</compile_context>

<pallas_src>
import math

import jax
import jax.numpy as jnp
import numpy as np
from jax.experimental import pallas as pl
from jax.experimental.pallas import tpu as pltpu


def _round_up(x: int, m: int) -> int:
    return ((x + m - 1) // m) * m


def _vmem_capacity_bytes() -> int:
    """Per-core VMEM capacity (v5e/v6e: 128 MiB, v7x: 64 MiB). Conservative fallback."""
    try:
        cap = int(pltpu.get_tpu_info().vmem_capacity_bytes)
        if cap > 0:
            return cap
    except Exception:
        pass
    return 64 * 1024 * 1024  # assume v7x (smallest) if the query is unavailable


# -----------------------------------------------------------------------------
# Fast path: small vocab -> VMEM-resident table, gather = one-hot MXU matmul.
# -----------------------------------------------------------------------------
def _make_vmem_table_kernel(scale: float, vocab_size: int):
    def kernel(ids_ref, emb_ref, out_ref):
        # ids_ref: (blk, 1) int32 (VMEM), emb_ref: (vocab, D) (VMEM), out_ref: (blk, D).
        blk = out_ref.shape[0]
        # nn.Embedding would raise on OOB ids; we clamp instead (documented difference).
        ids = jnp.clip(ids_ref[...], 0, vocab_size - 1)                    # (blk, 1)
        cols = jax.lax.broadcasted_iota(jnp.int32, (blk, vocab_size), 1)   # (blk, V)
        onehot = (ids == cols).astype(emb_ref.dtype)                       # (blk, V)
        gathered = jnp.dot(onehot, emb_ref[...],
                           preferred_element_type=jnp.float32)             # (blk, D)
        out_ref[...] = (gathered * scale).astype(out_ref.dtype)

    return kernel


# -----------------------------------------------------------------------------
# General path: HBM table, rolling-window row DMAs straight into the output block.
# -----------------------------------------------------------------------------
def _make_dma_gather_kernel(scale: float, block_t: int, vocab_size: int,
                            n_inflight: int, chunk: int):
    n_chunks = block_t // chunk
    slots_per_window = n_inflight // chunk

    def kernel(ids_ref, emb_hbm, out_ref, sems):
        # ids_ref: (block_t,) int32 in SMEM (per-block), emb_hbm: (vocab, D) HBM ref,
        # out_ref: (block_t, D) VMEM output block, sems: (n_inflight,) DMA semaphores.

        def start_row(t, rid, slot):
            pltpu.make_async_copy(
                emb_hbm.at[pl.ds(rid, 1), :],
                out_ref.at[pl.ds(t, 1), :],      # gather lands directly in the output
                sems.at[slot],
            ).start()

        def wait_row(slot):
            # Dummy fixed-shape descriptor: the wait only needs the semaphore and the
            # transfer size, so we never re-read/clip the id on the wait path.
            pltpu.make_async_copy(
                emb_hbm.at[pl.ds(0, 1), :],
                out_ref.at[pl.ds(0, 1), :],
                sems.at[slot],
            ).wait()

        # Prime the window: n_inflight row DMAs in flight (static unroll).
        for t in range(n_inflight):
            rid = jnp.clip(ids_ref[t], 0, vocab_size - 1)
            start_row(t, rid, t)

        # Rolling window, unrolled `chunk` rows per iteration so descriptor issue for
        # row t+n_inflight overlaps the wait on row t.
        @pl.loop(0, n_chunks)
        def _(c):
            row0 = pl.multiple_of(c * chunk, chunk)
            slot0 = (c % slots_per_window) * chunk
            for j in range(chunk):               # static unroll
                t = row0 + j
                nxt = t + n_inflight
                # Hoist the refill row's id load + clamp above the wait (scalar unit
                # computes the next DMA's source address while the wait stalls).
                nxt_safe = jnp.minimum(nxt, block_t - 1)
                rid_next = jnp.clip(ids_ref[nxt_safe], 0, vocab_size - 1)
                wait_row(slot0 + j)

                @pl.when(nxt < block_t)
                def _():
                    start_row(nxt, rid_next, slot0 + j)

            # Scale rows as they land (chunk granularity) instead of one bulk multiply
            # after the last wait -- hides the VPU work under the tail DMAs.
            out_ref[pl.ds(row0, chunk), :] = out_ref[pl.ds(row0, chunk), :] * scale

    return kernel


# -----------------------------------------------------------------------------
# Wrapper: InputEmbedding.forward == embedding(x) * sqrt(d_model)
# -----------------------------------------------------------------------------
def input_embedding(token_ids: jax.Array, emb_table: jax.Array,
                    *, block_t: int = 512, n_inflight: int = 32,
                    use_vmem_table: bool | None = None) -> jax.Array:
    B, S = token_ids.shape
    vocab_size, d_model = emb_table.shape
    scale = math.sqrt(d_model)
    itemsize = emb_table.dtype.itemsize

    flat_ids = token_ids.reshape(-1).astype(jnp.int32)  # (B*S,)
    n_tok = flat_ids.shape[0]

    # --- VMEM budgeting (v7x-safe: query the chip instead of assuming 128 MiB) ---
    vmem_budget = (_vmem_capacity_bytes() * 3) // 4      # leave headroom
    table_bytes = vocab_size * d_model * itemsize

    if use_vmem_table is None:
        use_vmem_table = (vocab_size <= 2048
                          and table_bytes <= min(4 << 20, vmem_budget // 8))

    # --- Token block: as big as the (double-buffered) output slab allows ---
    reserved = table_bytes if use_vmem_table else 0
    out_budget = max(1 << 20, (vmem_budget - reserved) // 2)
    max_blk = max(8, out_budget // (2 * d_model * itemsize))
    blk = int(min(block_t, max_blk, _round_up(n_tok, 8)))
    blk = max(8, (blk // 8) * 8)

    padded_n = _round_up(n_tok, blk)
    if padded_n != n_tok:
        flat_ids = jnp.pad(flat_ids, (0, padded_n - n_tok))  # padded rows gather row 0
    grid = (padded_n // blk,)
    out_shape = jax.ShapeDtypeStruct((padded_n, d_model), emb_table.dtype)

    if use_vmem_table:
        need = reserved + 2 * blk * d_model * itemsize + 2 * blk * 4 + (2 << 20)
        vmem_limit = int(min(vmem_budget, max(32 << 20, 2 * need)))
        ids2d = flat_ids.reshape(padded_n, 1)
        out_flat = pl.pallas_call(
            _make_vmem_table_kernel(scale, vocab_size),
            grid_spec=pltpu.PrefetchScalarGridSpec(
                num_scalar_prefetch=0,
                grid=grid,
                in_specs=[
                    pl.BlockSpec((blk, 1), lambda i: (i, 0)),                 # ids (VMEM)
                    pl.BlockSpec((vocab_size, d_model), lambda i: (0, 0)),    # table (VMEM)
                ],
                out_specs=pl.BlockSpec((blk, d_model), lambda i: (i, 0)),
            ),
            out_shape=out_shape,
            compiler_params=pltpu.CompilerParams(
                dimension_semantics=("parallel",),
                vmem_limit_bytes=vmem_limit,
            ),
        )(ids2d, emb_table)
    else:
        chunk = 8
        n_inflight = int(max(chunk, min(n_inflight, blk)))
        n_inflight = (n_inflight // chunk) * chunk
        need = 2 * blk * d_model * itemsize + (2 << 20)
        vmem_limit = int(min(vmem_budget, max(32 << 20, 2 * need)))
        out_flat = pl.pallas_call(
            _make_dma_gather_kernel(scale, blk, vocab_size, n_inflight, chunk),
            grid_spec=pltpu.PrefetchScalarGridSpec(
                num_scalar_prefetch=0,
                grid=grid,
                in_specs=[
                    # Per-block ids in SMEM (no whole-stream scalar prefetch).
                    pl.BlockSpec((blk,), lambda i: (i,), memory_space=pltpu.SMEM),
                    # Embedding table stays in HBM; rows gathered via manual DMAs.
                    pl.BlockSpec(memory_space=pl.ANY),
                ],
                out_specs=pl.BlockSpec((blk, d_model), lambda i: (i, 0)),
                scratch_shapes=[pltpu.SemaphoreType.DMA((n_inflight,))],
            ),
            out_shape=out_shape,
            compiler_params=pltpu.CompilerParams(
                dimension_semantics=("parallel",),
                vmem_limit_bytes=vmem_limit,
            ),
        )(flat_ids, emb_table)

    return out_flat[:n_tok].reshape(B, S, d_model)


if __name__ == "__main__":
    # Module hyper-params (small, deterministic synthetic init; matches the spec demo).
    d_model = 128
    vocab_size = 64
    B, S = 2, 8

    key = jax.random.PRNGKey(0)
    k_emb, k_ids = jax.random.split(key)

    # nn.Embedding default init ~ N(0, 1)
    emb_table = jax.random.normal(k_emb, (vocab_size, d_model), dtype=jnp.float32)
    token_ids = jax.random.randint(k_ids, (B, S), 0, vocab_size, dtype=jnp.int32)
    ref = jnp.take(emb_table, token_ids, axis=0) * math.sqrt(d_model)

    # 1) Auto dispatch -> small-table VMEM fast path (one-hot MXU gather).
    #    Tolerance is loose-ish because the MXU may round f32 operands through
    #    multi-pass bf16; the check still catches any wrong-row / wrong-scale bug.
    out = jax.block_until_ready(input_embedding(token_ids, emb_table))
    assert out.shape == (B, S, d_model)
    assert np.allclose(np.asarray(out), np.asarray(ref), rtol=5e-2, atol=5e-2)

    # 2) Force the general HBM DMA-gather path (larger vocab, enough tokens that the
    #    rolling window actually refills).  This path is an exact copy+scale.
    vocab2, B2, S2 = 4096, 4, 64
    k_emb2, k_ids2 = jax.random.split(jax.random.PRNGKey(0))
    emb2 = jax.random.normal(k_emb2, (vocab2, d_model), dtype=jnp.float32)
    ids2 = jax.random.randint(k_ids2, (B2, S2), 0, vocab2, dtype=jnp.int32)
    out2 = jax.block_until_ready(input_embedding(ids2, emb2, use_vmem_table=False))
    ref2 = jnp.take(emb2, ids2, axis=0) * math.sqrt(d_model)
    assert out2.shape == (B2, S2, d_model)
    assert np.allclose(np.asarray(out2), np.asarray(ref2), rtol=1e-6, atol=1e-6)

    print("KERNEL_OK")
</pallas_src>

<mosaic_0001>
module attributes {stable_mosaic.version = 11 : i64} {
  func.func @kernel(%arg0: i32, %arg1: memref<16x1xi32, #tpu.memory_space<vmem>>, %arg2: memref<64x128xf32, #tpu.memory_space<vmem>>, %arg3: memref<16x128xf32, #tpu.memory_space<vmem>>) attributes {dimension_semantics = [#tpu.dimension_semantics<parallel>], iteration_bounds = array<i64: 1>, scalar_prefetch = 0 : i64, scratch_operands = 0 : i64, tpu.core_type = #tpu.core_type<tc>, window_params = [{transform_indices = @transform_0, window_bounds = array<i64: 16, 1>}, {pipeline_mode = #tpu.pipeline_mode<synchronous>, transform_indices = @transform_1, window_bounds = array<i64: 64, 128>}, {transform_indices = @transform_2, window_bounds = array<i64: 16, 128>}]} {
    %c0 = arith.constant 0 : index
    %c0_0 = arith.constant 0 : index
    %0 = vector.load %arg1[%c0, %c0_0] : memref<16x1xi32, #tpu.memory_space<vmem>>, vector<16x1xi32>
    %c0_i32 = arith.constant 0 : i32
    %c63_i32 = arith.constant 63 : i32
    %1 = vector.broadcast %c0_i32 : i32 to vector<16x1xi32>
    %2 = arith.maxsi %1, %0 : vector<16x1xi32>
    %3 = vector.broadcast %c63_i32 : i32 to vector<16x1xi32>
    %4 = arith.minsi %3, %2 : vector<16x1xi32>
    %5 = tpu.iota {dimensions = array<i32: 1>} : vector<16x64xi32>
    %6 = vector.broadcast %4 : vector<16x1xi32> to vector<16x64xi32>
    %7 = arith.cmpi eq, %6, %5 : vector<16x64xi32>
    %8 = arith.extui %7 : vector<16x64xi1> to vector<16x64xi32>
    %9 = arith.sitofp %8 : vector<16x64xi32> to vector<16x64xf32>
    %c0_1 = arith.constant 0 : index
    %c0_2 = arith.constant 0 : index
    %10 = vector.load %arg2[%c0_1, %c0_2] : memref<64x128xf32, #tpu.memory_space<vmem>>, vector<64x128xf32>
    %cst = arith.constant dense<0.000000e+00> : vector<16x128xf32>
    %11 = tpu.matmul %9, %10, %cst {dimension_numbers = #tpu.dot_dimension_numbers<[1], [0], [0], [1], [0, 0, 1, 1], [], []>} : vector<16x64xf32>, vector<64x128xf32>, vector<16x128xf32> -> vector<16x128xf32>
    %cst_3 = arith.constant 11.3137083 : f32
    %12 = vector.broadcast %cst_3 : f32 to vector<16x128xf32>
    %13 = arith.mulf %11, %12 : vector<16x128xf32>
    %c0_4 = arith.constant 0 : index
    %c0_5 = arith.constant 0 : index
    %14 = vector.load %arg3[%c0_4, %c0_5] : memref<16x128xf32, #tpu.memory_space<vmem>>, vector<16x128xf32>
    tpu.vector_store %arg3[%c0_4, %c0_5], %13 {strides = array<i32>} : memref<16x128xf32, #tpu.memory_space<vmem>>, vector<16x128xf32>,
    return
  }
  func.func @transform_0(%arg0: i32) -> (i32, i32) {
    %c0_i32 = arith.constant 0 : i32
    %c0_i32_0 = arith.constant 0 : i32
    return %arg0, %c0_i32 : i32, i32
  }
  func.func @transform_1(%arg0: i32) -> (i32, i32) {
    %c0_i32 = arith.constant 0 : i32
    %c0_i32_0 = arith.constant 0 : i32
    %c0_i32_1 = arith.constant 0 : i32
    return %c0_i32, %c0_i32_0 : i32, i32
  }
  func.func @transform_2(%arg0: i32) -> (i32, i32) {
    %c0_i32 = arith.constant 0 : i32
    %c0_i32_0 = arith.constant 0 : i32
    return %arg0, %c0_i32 : i32, i32
  }
}

</mosaic_0001>

<llo_original>
// kernel: tpu_custom_call.1
$region0: #{tpu_custom_call.1}
  #allocation0 [shape = 'u32[]', space=smem, size = 0x4, offset = 0x4, fixed_abs, tag = 'smem constant byte address 0x4 - core index']
  #allocation1 [shape = 'u32[144,128]{1,0:T(1,128)}', space=vmem, size = 0x12000, scoped, tag = 'internal scratch']
  %s0 = inlined_call_operand.vmem [shape: s32[16,1], index: 0, kind: input, shape index: {}]
  %s1 = inlined_call_operand.hbm [shape: f32[64,128], index: 1, kind: input, shape index: {}]
  %s2 = inlined_call_operand.hbm [shape: f32[16,128], index: 2, kind: output, shape index: {}]
  %s3 = sld [smem:[#allocation0]]
  $region22: #{tpu_custom_call.1} parent=0
    _
  %s5 = ssub.s32 1, %s3
  %s6 = scalar_select 0, %s5, %s3
  $region1: #{tpu_custom_call.1} parent=0
    #allocation2 [shape = 'u8[32768]{0}', space=vmem, size = 0x8000, scoped, tag = 'input window, operand 1, single buffered']
    #allocation3 [shape = 's32[1]{0}', space=sflag, size = 0x4, scoped, tag = 'scoped memory for tpu_custom_call.1']
    #allocation4 [shape = 's32[1]{0}', space=sflag, size = 0x4, scoped, tag = 'scoped memory for tpu_custom_call.1']
    #allocation5 [shape = 'u8[8192]{0}', space=vmem, size = 0x2000, scoped, tag = 'output window, operand 0, single buffered']
    %7 = vsyncpa [#allocation3], 0
    %8 = vsyncpa [#allocation4], 0
    // Predicated region
    $region2: #{tpu_custom_call.1} parent=1 // pred_check
      _
    $region3: #{tpu_custom_call.1} parent=1 // pred_check_branch
      %10 = sbr.rel (0) target = $region5
    $region4: #{tpu_custom_call.1} parent=1 // pred_region
      _
    $region5: #{tpu_custom_call.1} parent=1 // pred_fallthru
      _
    // Predicated region
    $region6: #{tpu_custom_call.1} parent=1 // pred_check
      _
    $region7: #{tpu_custom_call.1} parent=1 // pred_check_branch
      %12 = sbr.rel (0) target = $region9
    $region8: #{tpu_custom_call.1} parent=1 // pred_region
      %s14 = ssub.s32 1024, 1024
      %15 = vsyncadd [#allocation3], %s14
      %s16 = sshll.u32 [#allocation2], 4
      %s17 = int_to_ptr.vmem [resolvable:$true] %s16
      %22 = dma.hbm_to_vmem [thread:$0]  %s1, 1024, %s17, [#allocation3], 128, 128, 8
    $region9: #{tpu_custom_call.1} parent=1 // pred_fallthru
      _
    // Predicated region
    $region10: #{tpu_custom_call.1} parent=1 // pred_check
      _
    $region11: #{tpu_custom_call.1} parent=1 // pred_check_branch
      %24 = sbr.rel (0) target = $region13
    $region12: #{tpu_custom_call.1} parent=1 // pred_region
      %25 = dma.done [#allocation3], 1024
    $region13: #{tpu_custom_call.1} parent=1 // pred_fallthru
      _
    %v26 = vld [vmem:[%s0] sm:$0xff]
    %v27 = vld [vmem:[%s0 + $0x8] sm:$0xff]
    %vm28 = vcmp.gt.s32.totalorder %v26, 0
    %v29 = vsel %vm28, %v26, 0
    %vm30 = vcmp.gt.s32.totalorder %v27, 0
    %v31 = vsel %vm30, %v27, 0
    %vm32 = vcmp.lt.s32.totalorder %v29, 63
    %v33 = vsel %vm32, %v29, 63
    %vm34 = vcmp.lt.s32.totalorder %v31, 63
    %v35 = vsel %vm34, %v31, 63
    %v36 = vlaneseq
    %v37 = vand.u32 %v36, 127
    %38 = vset.pattern.permute.xlu0 0
    %39 = vperm.xlu0 %38, %v33
    %v40 = vpop.permute.xlu0 %39
    %41 = vset.pattern.permute.xlu0 0
    %42 = vperm.xlu0 %41, %v35
    %v43 = vpop.permute.xlu0 %42
    %vm44 = vcmp.eq.s32.totalorder %v40, %v37
    %vm45 = vcmp.eq.s32.totalorder %v43, %v37
    %v46 = vsel %vm44, 1, 0
    %v47 = vsel %vm45, 1, 0
    %v48 = vcvt.s32.f32 %v46
    %v49 = vcvt.s32.f32 %v47
    %v50 = vld [vmem:[#allocation2] sm:$0xff]
    %v51 = vld [vmem:[#allocation2 + $0x8] sm:$0xff]
    %v52 = vld [vmem:[#allocation2 + $0x10] sm:$0xff]
    %v53 = vld [vmem:[#allocation2 + $0x18] sm:$0xff]
    %v54 = vld [vmem:[#allocation2 + $0x20] sm:$0xff]
    %v55 = vld [vmem:[#allocation2 + $0x28] sm:$0xff]
    %v56 = vld [vmem:[#allocation2 + $0x30] sm:$0xff]
    %v57 = vld [vmem:[#allocation2 + $0x38] sm:$0xff]
    %vm58 = vcmask 523264
    %v60 = vsel %vm58, %v48, 0
    %v63 = vsel %vm58, %v49, 0
    %65 = vmatprep.subr.mxu0 0.0
    %66 = vmatpush1.msra.mxu0 %v50
    %67 = vmatprep.subr.mxu0 0.0
    %68 = vmatpush1.msra.mxu0 %v51
    %69 = vmatprep.subr.mxu0 0.0
    %70 = vmatpush1.msra.mxu0 %v52
    %71 = vmatprep.subr.mxu0 0.0
    %72 = vmatpush1.msra.mxu0 %v53
    %73 = vmatprep.subr.mxu0 0.0
    %74 = vmatpush1.msra.mxu0 %v54
    %75 = vmatprep.subr.mxu0 0.0
    %76 = vmatpush1.msra.mxu0 %v55
    %77 = vmatprep.subr.mxu0 0.0
    %78 = vmatpush1.msra.mxu0 %v56
    %79 = vmatprep.subr.mxu0 0.0
    %80 = vmatpush1.msra.mxu0 %v57
    %81 = vmatprep.subr.mxu0 0.0
    %82 = vmatpush1.msra.mxu0 0.0
    %83 = vmatprep.subr.mxu0 0.0
    %84 = vmatpush1.msra.mxu0 0.0
    %85 = vmatprep.subr.mxu0 0.0
    %86 = vmatpush1.msra.mxu0 0.0
    %87 = vmatprep.subr.mxu0 0.0
    %88 = vmatpush1.msra.mxu0 0.0
    %89 = vmatprep.subr.mxu0 0.0
    %90 = vmatpush1.msra.mxu0 0.0
    %91 = vmatprep.subr.mxu0 0.0
    %92 = vmatpush1.msra.mxu0 0.0
    %93 = vmatprep.subr.mxu0 0.0
    %94 = vmatpush1.msra.mxu0 0.0
    %95 = vmatprep.subr.mxu0 0.0
    %96 = vmatpush1.msra.mxu0 0.0
    %97 = vmatprep.subr.mxu0 0.0
    %98 = vmatpush1.msra.mxu0 0.0
    %99 = vmatprep.subr.mxu0 0.0
    %100 = vmatpush1.msra.mxu0 0.0
    %101 = vmatprep.subr.mxu0 0.0
    %102 = vmatpush1.msra.mxu0 0.0
    %103 = vmatprep.subr.mxu0 0.0
    %104 = vmatpush1.msra.mxu0 0.0
    %105 = vmatprep.subr.mxu0 0.0
    %106 = vmatpush1.msra.mxu0 0.0
    %107 = vmatprep.subr.mxu0 0.0
    %108 = vmatpush1.msra.mxu0 0.0
    %109 = vmatprep.subr.mxu0 0.0
    %110 = vmatpush1.msra.mxu0 0.0
    %111 = vmatprep.subr.mxu0 0.0
    %112 = vmatpush1.msra.mxu0 0.0
    %113 = vmatprep.subr.mxu0 0.0
    %114 = vmatpush1.msra.mxu0 0.0
    %115 = vmatprep.subr.mxu0 0.0
    %116 = vmatpush1.msra.mxu0 0.0
    %117 = vmatprep.subr.mxu0 0.0
    %118 = vmatpush1.msra.mxu0 0.0
    %119 = vmatprep.subr.mxu0 0.0
    %120 = vmatpush1.msra.mxu0 0.0
    %121 = vmatprep.subr.mxu0 0.0
    %122 = vmatpush1.msra.mxu0 0.0
    %123 = vmatprep.subr.mxu0 0.0
    %124 = vmatpush1.msra.mxu0 0.0
    %125 = vmatprep.subr.mxu0 0.0
    %126 = vmatpush1.msra.mxu0 0.0
    %127 = vmatprep.subr.mxu0 0.0
    %128 = vmatpush1.msra.mxu0 0.0
    %129 = vmatprep.mubr.f32.mxu0 0.0
    %130 = vmatmul.mubr.f32.gmra.mrb[0].mxu0 %v60
    %v131 = vpop.f32.mrb[0].mxu0
    %v132 = vadd.f32 0.0, %v131
    %v133 = vpop.f32.mrb[0].mxu0
    %134 = vmatprep.mubr.f32.mxu0 0.0
    %135 = vmatmul.mubr.f32.gmra.mrb[0].mxu0 %v63
    %v136 = vpop.f32.mrb[0].mxu0
    %v137 = vadd.f32 0.0, %v136
    %v138 = vpop.f32.mrb[0].mxu0
    %139 = vdwg.mxu0
    %v140 = vmul.f32 %v132, 11.313708
    %v141 = vmul.f32 %v137, 11.313708
    %142 = vst [vmem:[#allocation5] sm:$0xff] %v140
    %143 = vst [vmem:[#allocation5 + $0x8] sm:$0xff] %v141
    // Predicated region
    $region14: #{tpu_custom_call.1} parent=1 // pred_check
      _
    $region15: #{tpu_custom_call.1} parent=1 // pred_check_branch
      %145 = sbr.rel (0) target = $region17
    $region16: #{tpu_custom_call.1} parent=1 // pred_region
      %s147 = ssub.s32 256, 256
      %148 = vsyncadd [#allocation4], %s147
      %s149 = sshll.u32 [#allocation5], 4
      %s150 = int_to_ptr.vmem [resolvable:$true] %s149
      %155 = dma.vmem_to_hbm [thread:$0]  %s150, 256, %s2, [#allocation4], 128, 128, 8
    $region17: #{tpu_custom_call.1} parent=1 // pred_fallthru
      _
    // Predicated region
    $region18: #{tpu_custom_call.1} parent=1 // pred_check
      _
    $region19: #{tpu_custom_call.1} parent=1 // pred_check_branch
      %157 = sbr.rel (0) target = $region21
    $region20: #{tpu_custom_call.1} parent=1 // pred_region
      %158 = dma.done [#allocation4], 256
    $region21: #{tpu_custom_call.1} parent=1 // pred_fallthru
      _
    %159 = vsyncpa [#allocation3], 1
    %160 = vsyncpa [#allocation4], 1

</llo_original>
